<compile_context>
chip_gen: v5e
topology: v5e:2x2
jax: 0.10.0
libtpu: 0.0.40
codegen_flags: <defaults>
</compile_context>

<pallas_src>
import jax
import jax.numpy as jnp
from jax.experimental import pallas as pl
from jax.experimental.pallas import tpu as pltpu


def _mlp_softmax(x, w1, b1, w2, b2, w3, b3):
    """fc1->ReLU->fc2->ReLU->fc3->softmax.

    Matmul operands are cast to bf16 (MXU-native, halves weight traffic);
    accumulation and all elementwise math stay in f32 (v5e-safe).
    """
    h1 = jnp.dot(x.astype(jnp.bfloat16), w1, preferred_element_type=jnp.float32)
    h1 = jnp.maximum(h1 + b1, 0.0)

    h2 = jnp.dot(h1.astype(jnp.bfloat16), w2, preferred_element_type=jnp.float32)
    h2 = jnp.maximum(h2 + b2, 0.0)

    logits = jnp.dot(h2.astype(jnp.bfloat16), w3,
                     preferred_element_type=jnp.float32)
    logits = logits + b3

    # Numerically stable softmax; approx reciprocal lowers to the EUP slot.
    m = jnp.max(logits, axis=-1, keepdims=True)
    e = jnp.exp(logits - m)
    return e * pl.reciprocal(jnp.sum(e, axis=-1, keepdims=True), approx=True)


def actor_kernel_fused(x_ref, w1_ref, b1_ref, w2_ref, b2_ref, w3_ref, b3_ref,
                       probs_ref, head_ref):
    """Un-gridded small-batch kernel: probs + fused [mu, exp(sigma)] head."""
    probs = _mlp_softmax(x_ref[...], w1_ref[...], b1_ref[...], w2_ref[...],
                         b2_ref[...], w3_ref[...], b3_ref[...])
    probs_ref[...] = probs

    # forward(): mu, sigma = actor(state)[0]; sigma = exp(sigma)
    row0 = probs[0:1, :]                                     # (1, n_actions)
    col = jax.lax.broadcasted_iota(jnp.int32, row0.shape, 1)
    head_ref[...] = jnp.where(col == 1, jnp.exp(row0), row0)  # [mu, exp(sigma), ...]


def actor_kernel_tiled(x_ref, w1_ref, b1_ref, w2_ref, b2_ref, w3_ref, b3_ref,
                       probs_ref):
    """Batch-tiled kernel body (weights stay VMEM-resident across tiles)."""
    probs_ref[...] = _mlp_softmax(x_ref[...], w1_ref[...], b1_ref[...],
                                  w2_ref[...], b2_ref[...], w3_ref[...],
                                  b3_ref[...])


def actor_forward(state, params, *, batch_tile=128):
    """Returns (mu, sigma, probs) — the Normal parameters the PyTorch forward
    builds, plus the full softmax output for reference/testing."""
    w1, b1, w2, b2, w3, b3 = params
    batch, in_dim = state.shape
    fc1, fc2, n_act = w1.shape[1], w2.shape[1], w3.shape[1]

    if batch > batch_tile and batch % batch_tile == 0:
        # Batched / tiled path: grid over batch tiles, 'parallel' so v7x can
        # shard across both TensorCores; weights use constant index_maps so
        # they are fetched once and reused across the whole batch.
        probs = pl.pallas_call(
            actor_kernel_tiled,
            out_shape=jax.ShapeDtypeStruct((batch, n_act), jnp.float32),
            grid=(batch // batch_tile,),
            in_specs=[
                pl.BlockSpec((batch_tile, in_dim), lambda i: (i, 0)),  # state
                pl.BlockSpec((in_dim, fc1), lambda i: (0, 0)),         # W1
                pl.BlockSpec((1, fc1), lambda i: (0, 0)),              # b1
                pl.BlockSpec((fc1, fc2), lambda i: (0, 0)),            # W2
                pl.BlockSpec((1, fc2), lambda i: (0, 0)),              # b2
                pl.BlockSpec((fc2, n_act), lambda i: (0, 0)),          # W3
                pl.BlockSpec((1, n_act), lambda i: (0, 0)),            # b3
            ],
            out_specs=pl.BlockSpec((batch_tile, n_act), lambda i: (i, 0)),
            compiler_params=pltpu.CompilerParams(
                dimension_semantics=("parallel",)),
        )(state, w1, b1, w2, b2, w3, b3)
        mu = probs[0, 0]
        sigma = jnp.exp(probs[0, 1])
    else:
        # Small-batch path: single un-gridded invocation, everything in VMEM,
        # mu / exp(sigma) fused into the kernel.
        vmem = pl.BlockSpec(memory_space=pltpu.MemorySpace.VMEM)
        probs, head = pl.pallas_call(
            actor_kernel_fused,
            out_shape=(jax.ShapeDtypeStruct((batch, n_act), jnp.float32),
                       jax.ShapeDtypeStruct((1, n_act), jnp.float32)),
            in_specs=[vmem] * 7,
            out_specs=(vmem, vmem),
        )(state, w1, b1, w2, b2, w3, b3)
        mu = head[0, 0]
        sigma = head[0, 1]

    # TODO(synk): torch.distributions.Normal has no Pallas/JAX-kernel
    # equivalent; we return its (mu, sigma) parameters instead of a
    # distribution object.
    return mu, sigma, probs


def init_params(key, input_dims, fc1_dims, fc2_dims, n_actions):
    """nn.Linear-style U(-1/sqrt(fan_in), 1/sqrt(fan_in)) init.
    Weights stored bf16 (halves HBM->VMEM traffic), biases stay f32."""
    ks = jax.random.split(key, 6)

    def linear(kw, kb, fan_in, fan_out):
        bound = 1.0 / jnp.sqrt(jnp.float32(fan_in))
        w = jax.random.uniform(kw, (fan_in, fan_out), jnp.float32, -bound, bound)
        b = jax.random.uniform(kb, (1, fan_out), jnp.float32, -bound, bound)
        return w.astype(jnp.bfloat16), b

    w1, b1 = linear(ks[0], ks[1], input_dims, fc1_dims)
    w2, b2 = linear(ks[2], ks[3], fc1_dims, fc2_dims)
    w3, b3 = linear(ks[4], ks[5], fc2_dims, n_actions)
    return (w1, b1, w2, b2, w3, b3)


def ref_forward(state, params):
    """Pure-JAX reference with matching bf16 matmul operands / f32 accum."""
    w1, b1, w2, b2, w3, b3 = params
    h1 = jnp.maximum(
        jnp.dot(state.astype(jnp.bfloat16), w1,
                preferred_element_type=jnp.float32) + b1, 0.0)
    h2 = jnp.maximum(
        jnp.dot(h1.astype(jnp.bfloat16), w2,
                preferred_element_type=jnp.float32) + b2, 0.0)
    logits = jnp.dot(h2.astype(jnp.bfloat16), w3,
                     preferred_element_type=jnp.float32) + b3
    return jax.nn.softmax(logits, axis=-1)


if __name__ == "__main__":
    key = jax.random.PRNGKey(0)
    k_state, k_params, k_big = jax.random.split(key, 3)

    # Small, module-consistent shapes.
    batch = 2
    input_dims = 16       # env observation size
    fc1_dims = 256
    fc2_dims = 256
    n_actions = 2         # continuous PPO head: output[0] = (mu, sigma)

    state = jax.random.normal(k_state, (batch, input_dims), jnp.float32)
    params = init_params(k_params, input_dims, fc1_dims, fc2_dims, n_actions)

    fwd = jax.jit(actor_forward)

    # --- small-batch (un-gridded, fused-head) path ---
    mu, sigma, probs = fwd(state, params)
    jax.block_until_ready((mu, sigma, probs))

    ref_probs = ref_forward(state, params)
    assert jnp.allclose(probs, ref_probs, atol=2e-3, rtol=2e-3), "probs mismatch"
    assert jnp.allclose(mu, ref_probs[0, 0], atol=2e-3, rtol=2e-3), "mu mismatch"
    assert jnp.allclose(sigma, jnp.exp(ref_probs[0, 1]), atol=2e-3, rtol=2e-3), \
        "sigma mismatch"

    # --- batched (tiled, weight-resident, 'parallel' batch axis) path ---
    big_batch = 256
    state_big = jax.random.normal(k_big, (big_batch, input_dims), jnp.float32)
    mu_b, sigma_b, probs_b = fwd(state_big, params)
    jax.block_until_ready((mu_b, sigma_b, probs_b))

    ref_big = ref_forward(state_big, params)
    assert jnp.allclose(probs_b, ref_big, atol=2e-3, rtol=2e-3), "tiled probs mismatch"
    assert jnp.allclose(mu_b, ref_big[0, 0], atol=2e-3, rtol=2e-3), "tiled mu mismatch"
    assert jnp.allclose(sigma_b, jnp.exp(ref_big[0, 1]), atol=2e-3, rtol=2e-3), \
        "tiled sigma mismatch"

    print("KERNEL_OK")
</pallas_src>

<mosaic_0001>
module attributes {stable_mosaic.version = 11 : i64} {
  func.func @actor_kernel_fused(%arg0: memref<2x16xf32, #tpu.memory_space<vmem>>, %arg1: memref<16x256xbf16, #tpu.memory_space<vmem>>, %arg2: memref<1x256xf32, #tpu.memory_space<vmem>>, %arg3: memref<256x256xbf16, #tpu.memory_space<vmem>>, %arg4: memref<1x256xf32, #tpu.memory_space<vmem>>, %arg5: memref<256x2xbf16, #tpu.memory_space<vmem>>, %arg6: memref<1x2xf32, #tpu.memory_space<vmem>>, %arg7: memref<2x2xf32, #tpu.memory_space<vmem>>, %arg8: memref<1x2xf32, #tpu.memory_space<vmem>>) attributes {dimension_semantics = [], scalar_prefetch = 0 : i64, scratch_operands = 0 : i64, tpu.core_type = #tpu.core_type<tc>} {
    %c0 = arith.constant 0 : index
    %c0_0 = arith.constant 0 : index
    %0 = vector.load %arg0[%c0, %c0_0] : memref<2x16xf32, #tpu.memory_space<vmem>>, vector<2x16xf32>
    %c0_1 = arith.constant 0 : index
    %c0_2 = arith.constant 0 : index
    %1 = vector.load %arg1[%c0_1, %c0_2] : memref<16x256xbf16, #tpu.memory_space<vmem>>, vector<16x256xbf16>
    %c0_3 = arith.constant 0 : index
    %c0_4 = arith.constant 0 : index
    %2 = vector.load %arg2[%c0_3, %c0_4] : memref<1x256xf32, #tpu.memory_space<vmem>>, vector<1x256xf32>
    %c0_5 = arith.constant 0 : index
    %c0_6 = arith.constant 0 : index
    %3 = vector.load %arg3[%c0_5, %c0_6] : memref<256x256xbf16, #tpu.memory_space<vmem>>, vector<256x256xbf16>
    %c0_7 = arith.constant 0 : index
    %c0_8 = arith.constant 0 : index
    %4 = vector.load %arg4[%c0_7, %c0_8] : memref<1x256xf32, #tpu.memory_space<vmem>>, vector<1x256xf32>
    %c0_9 = arith.constant 0 : index
    %c0_10 = arith.constant 0 : index
    %5 = vector.load %arg5[%c0_9, %c0_10] : memref<256x2xbf16, #tpu.memory_space<vmem>>, vector<256x2xbf16>
    %c0_11 = arith.constant 0 : index
    %c0_12 = arith.constant 0 : index
    %6 = vector.load %arg6[%c0_11, %c0_12] : memref<1x2xf32, #tpu.memory_space<vmem>>, vector<1x2xf32>
    %7 = arith.truncf %0 : vector<2x16xf32> to vector<2x16xbf16>
    %cst = arith.constant dense<0.000000e+00> : vector<2x256xf32>
    %8 = tpu.matmul %7, %1, %cst {dimension_numbers = #tpu.dot_dimension_numbers<[1], [0], [0], [1], [0, 0, 1, 1], [], []>} : vector<2x16xbf16>, vector<16x256xbf16>, vector<2x256xf32> -> vector<2x256xf32>
    %9 = vector.broadcast %2 : vector<1x256xf32> to vector<2x256xf32>
    %10 = arith.addf %8, %9 : vector<2x256xf32>
    %cst_13 = arith.constant 0.000000e+00 : f32
    %11 = vector.broadcast %cst_13 : f32 to vector<2x256xf32>
    %12 = arith.maximumf %10, %11 : vector<2x256xf32>
    %13 = arith.truncf %12 : vector<2x256xf32> to vector<2x256xbf16>
    %cst_14 = arith.constant dense<0.000000e+00> : vector<2x256xf32>
    %14 = tpu.matmul %13, %3, %cst_14 {dimension_numbers = #tpu.dot_dimension_numbers<[1], [0], [0], [1], [0, 0, 1, 1], [], []>} : vector<2x256xbf16>, vector<256x256xbf16>, vector<2x256xf32> -> vector<2x256xf32>
    %15 = vector.broadcast %4 : vector<1x256xf32> to vector<2x256xf32>
    %16 = arith.addf %14, %15 : vector<2x256xf32>
    %cst_15 = arith.constant 0.000000e+00 : f32
    %17 = vector.broadcast %cst_15 : f32 to vector<2x256xf32>
    %18 = arith.maximumf %16, %17 : vector<2x256xf32>
    %19 = arith.truncf %18 : vector<2x256xf32> to vector<2x256xbf16>
    %cst_16 = arith.constant dense<0.000000e+00> : vector<2x2xf32>
    %20 = tpu.matmul %19, %5, %cst_16 {dimension_numbers = #tpu.dot_dimension_numbers<[1], [0], [0], [1], [0, 0, 1, 1], [], []>} : vector<2x256xbf16>, vector<256x2xbf16>, vector<2x2xf32> -> vector<2x2xf32>
    %21 = vector.broadcast %6 : vector<1x2xf32> to vector<2x2xf32>
    %22 = arith.addf %20, %21 : vector<2x2xf32>
    %cst_17 = arith.constant dense<0xFF800000> : vector<2xf32>
    %23 = vector.multi_reduction <maximumf>, %22, %cst_17 [1] : vector<2x2xf32> to vector<2xf32>
    %24 = vector.shape_cast %23 : vector<2xf32> to vector<2x1xf32>
    %25 = vector.broadcast %24 : vector<2x1xf32> to vector<2x2xf32>
    %26 = arith.subf %22, %25 : vector<2x2xf32>
    %27 = math.exp %26 : vector<2x2xf32>
    %cst_18 = arith.constant dense<0.000000e+00> : vector<2xf32>
    %28 = vector.multi_reduction <add>, %27, %cst_18 [1] : vector<2x2xf32> to vector<2xf32>
    %29 = vector.shape_cast %28 : vector<2xf32> to vector<2x1xf32>
    %30 = tpu.reciprocal %29 {approx = true} : vector<2x1xf32> -> vector<2x1xf32>
    %31 = vector.broadcast %30 : vector<2x1xf32> to vector<2x2xf32>
    %32 = arith.mulf %27, %31 : vector<2x2xf32>
    %c0_19 = arith.constant 0 : index
    %c0_20 = arith.constant 0 : index
    %33 = vector.load %arg7[%c0_19, %c0_20] : memref<2x2xf32, #tpu.memory_space<vmem>>, vector<2x2xf32>
    tpu.vector_store %arg7[%c0_19, %c0_20], %32 {strides = array<i32>} : memref<2x2xf32, #tpu.memory_space<vmem>>, vector<2x2xf32>,
    %34 = vector.extract_strided_slice %32 {offsets = [0, 0], sizes = [1, 2], strides = [1, 1]} : vector<2x2xf32> to vector<1x2xf32>
    %35 = tpu.iota {dimensions = array<i32: 1>} : vector<1x2xi32>
    %c1_i32 = arith.constant 1 : i32
    %36 = vector.broadcast %c1_i32 : i32 to vector<1x2xi32>
    %37 = arith.cmpi eq, %35, %36 : vector<1x2xi32>
    %38 = math.exp %34 : vector<1x2xf32>
    %39 = arith.select %37, %38, %34 : vector<1x2xi1>, vector<1x2xf32>
    %c0_21 = arith.constant 0 : index
    %c0_22 = arith.constant 0 : index
    %40 = vector.load %arg8[%c0_21, %c0_22] : memref<1x2xf32, #tpu.memory_space<vmem>>, vector<1x2xf32>
    tpu.vector_store %arg8[%c0_21, %c0_22], %39 {strides = array<i32>} : memref<1x2xf32, #tpu.memory_space<vmem>>, vector<1x2xf32>,
    return
  }
}

</mosaic_0001>

<llo_original>
// kernel: actor_forward.1
$region0: #{actor_forward.1}
  #allocation0 [shape = 'u32[]', space=smem, size = 0x4, offset = 0x4, fixed_abs, tag = 'smem constant byte address 0x4 - core index']
  #allocation1 [shape = 'u32[72,128]{1,0:T(1,128)}', space=vmem, size = 0x9000, scoped, tag = 'internal scratch']
  %s0 = inlined_call_operand.vmem [shape: f32[2,16], index: 0, kind: input, shape index: {}]
  %s1 = inlined_call_operand.vmem [shape: bf16[16,256], index: 1, kind: input, shape index: {}]
  %s2 = inlined_call_operand.vmem [shape: f32[1,256], index: 2, kind: input, shape index: {}]
  %s3 = inlined_call_operand.hbm [shape: bf16[256,256], index: 3, kind: input, shape index: {}]
  %s4 = inlined_call_operand.vmem [shape: f32[1,256], index: 4, kind: input, shape index: {}]
  %s5 = inlined_call_operand.vmem [shape: bf16[256,2], index: 5, kind: input, shape index: {}]
  %s6 = inlined_call_operand.vmem [shape: f32[1,2], index: 6, kind: input, shape index: {}]
  %s7 = inlined_call_operand.hbm [shape: f32[2,2], index: 7, kind: output, shape index: {0}]
  %s8 = inlined_call_operand.vmem [shape: f32[1,2], index: 8, kind: output, shape index: {1}]
  %9 = xla_tuple %s7, %s8
  %s10 = sld [smem:[#allocation0]]
  $region50: #{actor_forward.1} parent=0
    _
  %s12 = ssub.s32 1, %s10
  %s13 = scalar_select 0, %s12, %s10
  $region1: #{actor_forward.1} parent=0
    #allocation2 [shape = 'u8[131072]{0}', space=vmem, size = 0x20000, scoped, tag = 'input window, operand 3, single buffered']
    #allocation3 [shape = 's32[1]{0}', space=sflag, size = 0x4, scoped, tag = 'scoped memory for actor_forward.1']
    #allocation4 [shape = 's32[1]{0}', space=sflag, size = 0x4, scoped, tag = 'scoped memory for actor_forward.1']
    #allocation5 [shape = 'u8[1024]{0}', space=vmem, size = 0x400, scoped, tag = 'output window, operand 0, single buffered']
    %14 = vsyncpa [#allocation3], 0
    %15 = vsyncpa [#allocation4], 0
    // Predicated region
    $region2: #{actor_forward.1} parent=1 // pred_check
      _
    $region3: #{actor_forward.1} parent=1 // pred_check_branch
      %17 = sbr.rel (0) target = $region5
    $region4: #{actor_forward.1} parent=1 // pred_region
      _
    $region5: #{actor_forward.1} parent=1 // pred_fallthru
      _
    // Predicated region
    $region6: #{actor_forward.1} parent=1 // pred_check
      _
    $region7: #{actor_forward.1} parent=1 // pred_check_branch
      %19 = sbr.rel (0) target = $region9
    $region8: #{actor_forward.1} parent=1 // pred_region
      _
    $region9: #{actor_forward.1} parent=1 // pred_fallthru
      _
    // Predicated region
    $region10: #{actor_forward.1} parent=1 // pred_check
      _
    $region11: #{actor_forward.1} parent=1 // pred_check_branch
      %21 = sbr.rel (0) target = $region13
    $region12: #{actor_forward.1} parent=1 // pred_region
      _
    $region13: #{actor_forward.1} parent=1 // pred_fallthru
      _
    // Predicated region
    $region14: #{actor_forward.1} parent=1 // pred_check
      _
    $region15: #{actor_forward.1} parent=1 // pred_check_branch
      %23 = sbr.rel (0) target = $region17
    $region16: #{actor_forward.1} parent=1 // pred_region
      %25 = vsyncadd [#allocation3], 0
      %s26 = sshll.u32 %s3, 4
      %s27 = int_to_ptr.hbm [resolvable:$true] %s26
      %s28 = sshll.u32 [#allocation2], 4
      %s29 = int_to_ptr.vmem [resolvable:$true] %s28
      %34 = dma.hbm_to_vmem [thread:$0]  %s27, 4096, %s29, [#allocation3], 128, 128, 8
    $region17: #{actor_forward.1} parent=1 // pred_fallthru
      _
    // Predicated region
    $region18: #{actor_forward.1} parent=1 // pred_check
      _
    $region19: #{actor_forward.1} parent=1 // pred_check_branch
      %36 = sbr.rel (0) target = $region21
    $region20: #{actor_forward.1} parent=1 // pred_region
      _
    $region21: #{actor_forward.1} parent=1 // pred_fallthru
      _
    // Predicated region
    $region22: #{actor_forward.1} parent=1 // pred_check
      _
    $region23: #{actor_forward.1} parent=1 // pred_check_branch
      %38 = sbr.rel (0) target = $region25
    $region24: #{actor_forward.1} parent=1 // pred_region
      _
    $region25: #{actor_forward.1} parent=1 // pred_fallthru
      _
    // Predicated region
    $region26: #{actor_forward.1} parent=1 // pred_check
      _
    $region27: #{actor_forward.1} parent=1 // pred_check_branch
      %40 = sbr.rel (0) target = $region29
    $region28: #{actor_forward.1} parent=1 // pred_region
      _
    $region29: #{actor_forward.1} parent=1 // pred_fallthru
      _
    // Predicated region
    $region30: #{actor_forward.1} parent=1 // pred_check
      _
    $region31: #{actor_forward.1} parent=1 // pred_check_branch
      %42 = sbr.rel (0) target = $region33
    $region32: #{actor_forward.1} parent=1 // pred_region
      %44 = dma.done [#allocation3], 4096
    $region33: #{actor_forward.1} parent=1 // pred_fallthru
      _
    %v46 = vld [vmem:[%s0] sm:$0x3]
    %v47 = vld [vmem:[%s1] sm:$0xff]
    %v48 = vld [vmem:[%s1 + $0x8] sm:$0xff]
    %v49 = vld [vmem:[%s2] sm:$0x3]
    %v50 = vld [vmem:[#allocation2] sm:$0xff]
    %v51 = vld [vmem:[#allocation2 + $0x8] sm:$0xff]
    %v52 = vld [vmem:[#allocation2 + $0x10] sm:$0xff]
    %v53 = vld [vmem:[#allocation2 + $0x18] sm:$0xff]
    %v54 = vld [vmem:[#allocation2 + $0x20] sm:$0xff]
    %v55 = vld [vmem:[#allocation2 + $0x28] sm:$0xff]
    %v56 = vld [vmem:[#allocation2 + $0x30] sm:$0xff]
    %v57 = vld [vmem:[#allocation2 + $0x38] sm:$0xff]
    %v58 = vld [vmem:[#allocation2 + $0x40] sm:$0xff]
    %v59 = vld [vmem:[#allocation2 + $0x48] sm:$0xff]
    %v60 = vld [vmem:[#allocation2 + $0x50] sm:$0xff]
    %v61 = vld [vmem:[#allocation2 + $0x58] sm:$0xff]
    %v62 = vld [vmem:[#allocation2 + $0x60] sm:$0xff]
    %v63 = vld [vmem:[#allocation2 + $0x68] sm:$0xff]
    %v64 = vld [vmem:[#allocation2 + $0x70] sm:$0xff]
    %v65 = vld [vmem:[#allocation2 + $0x78] sm:$0xff]
    %v66 = vld [vmem:[#allocation2 + $0x80] sm:$0xff]
    %v67 = vld [vmem:[#allocation2 + $0x88] sm:$0xff]
    %v68 = vld [vmem:[#allocation2 + $0x90] sm:$0xff]
    %v69 = vld [vmem:[#allocation2 + $0x98] sm:$0xff]
    %v70 = vld [vmem:[#allocation2 + $0xa0] sm:$0xff]
    %v71 = vld [vmem:[#allocation2 + $0xa8] sm:$0xff]
    %v72 = vld [vmem:[#allocation2 + $0xb0] sm:$0xff]
    %v73 = vld [vmem:[#allocation2 + $0xb8] sm:$0xff]
    %v74 = vld [vmem:[#allocation2 + $0xc0] sm:$0xff]
    %v75 = vld [vmem:[#allocation2 + $0xc8] sm:$0xff]
    %v76 = vld [vmem:[#allocation2 + $0xd0] sm:$0xff]
    %v77 = vld [vmem:[#allocation2 + $0xd8] sm:$0xff]
    %v78 = vld [vmem:[#allocation2 + $0xe0] sm:$0xff]
    %v79 = vld [vmem:[#allocation2 + $0xe8] sm:$0xff]
    %v80 = vld [vmem:[#allocation2 + $0xf0] sm:$0xff]
    %v81 = vld [vmem:[#allocation2 + $0xf8] sm:$0xff]
    %v82 = vld [vmem:[%s4] sm:$0x3]
    %v83 = vld [vmem:[%s5] sm:$0xf]
    %v84 = vld [vmem:[%s5 + $0x4] sm:$0xf]
    %v85 = vld [vmem:[%s5 + $0x8] sm:$0xf]
    %v86 = vld [vmem:[%s5 + $0xc] sm:$0xf]
    %v87 = vld [vmem:[%s5 + $0x10] sm:$0xf]
    %v88 = vld [vmem:[%s5 + $0x14] sm:$0xf]
    %v89 = vld [vmem:[%s5 + $0x18] sm:$0xf]
    %v90 = vld [vmem:[%s5 + $0x1c] sm:$0xf]
    %v91 = vld [vmem:[%s5 + $0x20] sm:$0xf]
    %v92 = vld [vmem:[%s5 + $0x24] sm:$0xf]
    %v93 = vld [vmem:[%s5 + $0x28] sm:$0xf]
    %v94 = vld [vmem:[%s5 + $0x2c] sm:$0xf]
    %v95 = vld [vmem:[%s5 + $0x30] sm:$0xf]
    %v96 = vld [vmem:[%s5 + $0x34] sm:$0xf]
    %v97 = vld [vmem:[%s5 + $0x38] sm:$0xf]
    %v98 = vld [vmem:[%s5 + $0x3c] sm:$0xf]
    %v99 = vld [vmem:[%s5 + $0x40] sm:$0xf]
    %v100 = vld [vmem:[%s5 + $0x44] sm:$0xf]
    %v101 = vld [vmem:[%s5 + $0x48] sm:$0xf]
    %v102 = vld [vmem:[%s5 + $0x4c] sm:$0xf]
    %v103 = vld [vmem:[%s5 + $0x50] sm:$0xf]
    %v104 = vld [vmem:[%s5 + $0x54] sm:$0xf]
    %v105 = vld [vmem:[%s5 + $0x58] sm:$0xf]
    %v106 = vld [vmem:[%s5 + $0x5c] sm:$0xf]
    %v107 = vld [vmem:[%s5 + $0x60] sm:$0xf]
    %v108 = vld [vmem:[%s5 + $0x64] sm:$0xf]
    %v109 = vld [vmem:[%s5 + $0x68] sm:$0xf]
    %v110 = vld [vmem:[%s5 + $0x6c] sm:$0xf]
    %v111 = vld [vmem:[%s5 + $0x70] sm:$0xf]
    %v112 = vld [vmem:[%s5 + $0x74] sm:$0xf]
    %v113 = vld [vmem:[%s5 + $0x78] sm:$0xf]
    %v114 = vld [vmem:[%s5 + $0x7c] sm:$0xf]
    %v115 = vld [vmem:[%s6] sm:$0x1]
    %v116 = vpack.c.bf16 %v46, %v46
    %v118 = vperm.slane %v49, 0
    %v119 = vperm.slane %v49, 1
    %v124 = vunpack.c.l.b16 %v47
    %v125 = vunpack.c.h.b16 %v47
    %v126 = vunpack.c.l.b16 %v48
    %v127 = vunpack.c.h.b16 %v48
    %v128 = vpack.c.b16 %v126, %v124
    %v129 = vpack.c.b16 %v127, %v125
    %vm132 = vcmask 130048
    %v134 = vsel %vm132, %v116, 0
    %136 = vmatpush.bf16.msra.mxu0 0
    %137 = vmatpush.bf16.msra.mxu0 0
    %138 = vmatpush.bf16.msra.mxu0 0
    %139 = vmatpush.bf16.msra.mxu0 0
    %140 = vmatpush.bf16.msra.mxu0 0
    %141 = vmatpush.bf16.msra.mxu0 0
    %142 = vmatpush.bf16.msra.mxu0 0
    %143 = vmatpush.bf16.msra.mxu0 %v128
    %144 = vmatmul.bf16.gmra.mxu0 %v134
    %v145 = vpop.f32.mrf.mxu0
    %v146 = vadd.f32 %v118, %v145
    %v147 = vpop.f32.mrf.mxu0
    %148 = vdwg.mxu0
    %149 = vmatpush.bf16.msra.mxu0 0
    %150 = vmatpush.bf16.msra.mxu0 0
    %151 = vmatpush.bf16.msra.mxu0 0
    %152 = vmatpush.bf16.msra.mxu0 0
    %153 = vmatpush.bf16.msra.mxu0 0
    %154 = vmatpush.bf16.msra.mxu0 0
    %155 = vmatpush.bf16.msra.mxu0 0
    %156 = vmatpush.bf16.msra.mxu0 %v129
    %157 = vmatmul.bf16.gmra.mxu0 %v134
    %v158 = vpop.f32.mrf.mxu0
    %v159 = vadd.f32 %v119, %v158
    %v160 = vpop.f32.mrf.mxu0
    %161 = vdwg.mxu0
    %v162 = vmax.f32 %v146, 0.0
    %v163 = vmax.f32 %v159, 0.0
    %v164 = vpack.c.bf16 %v162, %v162
    %v165 = vpack.c.bf16 %v163, %v163
    %v167 = vperm.slane %v82, 0
    %v168 = vperm.slane %v82, 1
    %v203 = vunpack.c.l.b16 %v50
    %v204 = vunpack.c.h.b16 %v50
    %v205 = vunpack.c.l.b16 %v51
    %v206 = vunpack.c.h.b16 %v51
    %v207 = vunpack.c.l.b16 %v52
    %v208 = vunpack.c.h.b16 %v52
    %v209 = vunpack.c.l.b16 %v53
    %v210 = vunpack.c.h.b16 %v53
    %v211 = vunpack.c.l.b16 %v54
    %v212 = vunpack.c.h.b16 %v54
    %v213 = vunpack.c.l.b16 %v55
    %v214 = vunpack.c.h.b16 %v55
    %v215 = vunpack.c.l.b16 %v56
    %v216 = vunpack.c.h.b16 %v56
    %v217 = vunpack.c.l.b16 %v57
    %v218 = vunpack.c.h.b16 %v57
    %v219 = vunpack.c.l.b16 %v58
    %v220 = vunpack.c.h.b16 %v58
    %v221 = vunpack.c.l.b16 %v59
    %v222 = vunpack.c.h.b16 %v59
    %v223 = vunpack.c.l.b16 %v60
    %v224 = vunpack.c.h.b16 %v60
    %v225 = vunpack.c.l.b16 %v61
    %v226 = vunpack.c.h.b16 %v61
    %v227 = vunpack.c.l.b16 %v62
    %v228 = vunpack.c.h.b16 %v62
    %v229 = vunpack.c.l.b16 %v63
    %v230 = vunpack.c.h.b16 %v63
    %v231 = vunpack.c.l.b16 %v64
    %v232 = vunpack.c.h.b16 %v64
    %v233 = vunpack.c.l.b16 %v65
    %v234 = vunpack.c.h.b16 %v65
    %v235 = vunpack.c.l.b16 %v66
    %v236 = vunpack.c.h.b16 %v66
    %v237 = vunpack.c.l.b16 %v67
    %v238 = vunpack.c.h.b16 %v67
    %v239 = vunpack.c.l.b16 %v68
    %v240 = vunpack.c.h.b16 %v68
    %v241 = vunpack.c.l.b16 %v69
    %v242 = vunpack.c.h.b16 %v69
    %v243 = vunpack.c.l.b16 %v70
    %v244 = vunpack.c.h.b16 %v70
    %v245 = vunpack.c.l.b16 %v71
    %v246 = vunpack.c.h.b16 %v71
    %v247 = vunpack.c.l.b16 %v72
    %v248 = vunpack.c.h.b16 %v72
    %v249 = vunpack.c.l.b16 %v73
    %v250 = vunpack.c.h.b16 %v73
    %v251 = vunpack.c.l.b16 %v74
    %v252 = vunpack.c.h.b16 %v74
    %v253 = vunpack.c.l.b16 %v75
    %v254 = vunpack.c.h.b16 %v75
    %v255 = vunpack.c.l.b16 %v76
    %v256 = vunpack.c.h.b16 %v76
    %v257 = vunpack.c.l.b16 %v77
    %v258 = vunpack.c.h.b16 %v77
    %v259 = vunpack.c.l.b16 %v78
    %v260 = vunpack.c.h.b16 %v78
    %v261 = vunpack.c.l.b16 %v79
    %v262 = vunpack.c.h.b16 %v79
    %v263 = vunpack.c.l.b16 %v80
    %v264 = vunpack.c.h.b16 %v80
    %v265 = vunpack.c.l.b16 %v81
    %v266 = vunpack.c.h.b16 %v81
    %v267 = vpack.c.b16 %v205, %v203
    %v268 = vpack.c.b16 %v206, %v204
    %v269 = vpack.c.b16 %v209, %v207
    %v270 = vpack.c.b16 %v210, %v208
    %v271 = vpack.c.b16 %v213, %v211
    %v272 = vpack.c.b16 %v214, %v212
    %v273 = vpack.c.b16 %v217, %v215
    %v274 = vpack.c.b16 %v218, %v216
    %v275 = vpack.c.b16 %v221, %v219
    %v276 = vpack.c.b16 %v222, %v220
    %v277 = vpack.c.b16 %v225, %v223
    %v278 = vpack.c.b16 %v226, %v224
    %v279 = vpack.c.b16 %v229, %v227
    %v280 = vpack.c.b16 %v230, %v228
    %v281 = vpack.c.b16 %v233, %v231
    %v282 = vpack.c.b16 %v234, %v232
    %v283 = vpack.c.b16 %v237, %v235
    %v284 = vpack.c.b16 %v238, %v236
    %v285 = vpack.c.b16 %v241, %v239
    %v286 = vpack.c.b16 %v242, %v240
    %v287 = vpack.c.b16 %v245, %v243
    %v288 = vpack.c.b16 %v246, %v244
    %v289 = vpack.c.b16 %v249, %v247
    %v290 = vpack.c.b16 %v250, %v248
    %v291 = vpack.c.b16 %v253, %v251
    %v292 = vpack.c.b16 %v254, %v252
    %v293 = vpack.c.b16 %v257, %v255
    %v294 = vpack.c.b16 %v258, %v256
    %v295 = vpack.c.b16 %v261, %v259
    %v296 = vpack.c.b16 %v262, %v260
    %v297 = vpack.c.b16 %v265, %v263
    %v298 = vpack.c.b16 %v266, %v264
    %331 = vmatpush.bf16.msra.mxu0 %v281
    %332 = vmatpush.bf16.msra.mxu0 %v279
    %333 = vmatpush.bf16.msra.mxu0 %v277
    %334 = vmatpush.bf16.msra.mxu0 %v275
    %335 = vmatpush.bf16.msra.mxu0 %v273
    %336 = vmatpush.bf16.msra.mxu0 %v271
    %337 = vmatpush.bf16.msra.mxu0 %v269
    %338 = vmatpush.bf16.msra.mxu0 %v267
    %339 = vmatmul.bf16.gmra.mxu0 %v164
    %v340 = vpop.f32.mrf.mxu0
    %v341 = vadd.f32 %v167, %v340
    %v342 = vpop.f32.mrf.mxu0
    %343 = vdwg.mxu0
    %344 = vmatpush.bf16.msra.mxu0 %v297
    %345 = vmatpush.bf16.msra.mxu0 %v295
    %346 = vmatpush.bf16.msra.mxu0 %v293
    %347 = vmatpush.bf16.msra.mxu0 %v291
    %348 = vmatpush.bf16.msra.mxu0 %v289
    %349 = vmatpush.bf16.msra.mxu0 %v287
    %350 = vmatpush.bf16.msra.mxu0 %v285
    %351 = vmatpush.bf16.msra.mxu0 %v283
    %352 = vmatmul.bf16.gmra.mxu0 %v165
    %v353 = vpop.f32.mrf.mxu0
    %v354 = vadd.f32 %v341, %v353
    %v355 = vpop.f32.mrf.mxu0
    %356 = vdwg.mxu0
    %357 = vmatpush.bf16.msra.mxu0 %v282
    %358 = vmatpush.bf16.msra.mxu0 %v280
    %359 = vmatpush.bf16.msra.mxu0 %v278
    %360 = vmatpush.bf16.msra.mxu0 %v276
    %361 = vmatpush.bf16.msra.mxu0 %v274
    %362 = vmatpush.bf16.msra.mxu0 %v272
    %363 = vmatpush.bf16.msra.mxu0 %v270
    %364 = vmatpush.bf16.msra.mxu0 %v268
    %365 = vmatmul.bf16.gmra.mxu0 %v164
    %v366 = vpop.f32.mrf.mxu0
    %v367 = vadd.f32 %v168, %v366
    %v368 = vpop.f32.mrf.mxu0
    %369 = vdwg.mxu0
    %370 = vmatpush.bf16.msra.mxu0 %v298
    %371 = vmatpush.bf16.msra.mxu0 %v296
    %372 = vmatpush.bf16.msra.mxu0 %v294
    %373 = vmatpush.bf16.msra.mxu0 %v292
    %374 = vmatpush.bf16.msra.mxu0 %v290
    %375 = vmatpush.bf16.msra.mxu0 %v288
    %376 = vmatpush.bf16.msra.mxu0 %v286
    %377 = vmatpush.bf16.msra.mxu0 %v284
    %378 = vmatmul.bf16.gmra.mxu0 %v165
    %v379 = vpop.f32.mrf.mxu0
    %v380 = vadd.f32 %v367, %v379
    %v381 = vpop.f32.mrf.mxu0
    %382 = vdwg.mxu0
    %v383 = vmax.f32 %v354, 0.0
    %v384 = vmax.f32 %v380, 0.0
    %v385 = vpack.c.bf16 %v383, %v383
    %v386 = vpack.c.bf16 %v384, %v384
    %v388 = vperm.slane %v115, 0
    %v422 = vunpack.c.l.b16 %v83
    %v423 = vunpack.c.l.b16 %v84
    %v424 = vunpack.c.l.b16 %v85
    %v425 = vunpack.c.l.b16 %v86
    %v426 = vunpack.c.l.b16 %v87
    %v427 = vunpack.c.l.b16 %v88
    %v428 = vunpack.c.l.b16 %v89
    %v429 = vunpack.c.l.b16 %v90
    %v430 = vunpack.c.l.b16 %v91
    %v431 = vunpack.c.l.b16 %v92
    %v432 = vunpack.c.l.b16 %v93
    %v433 = vunpack.c.l.b16 %v94
    %v434 = vunpack.c.l.b16 %v95
    %v435 = vunpack.c.l.b16 %v96
    %v436 = vunpack.c.l.b16 %v97
    %v437 = vunpack.c.l.b16 %v98
    %v438 = vunpack.c.l.b16 %v99
    %v439 = vunpack.c.l.b16 %v100
    %v440 = vunpack.c.l.b16 %v101
    %v441 = vunpack.c.l.b16 %v102
    %v442 = vunpack.c.l.b16 %v103
    %v443 = vunpack.c.l.b16 %v104
    %v444 = vunpack.c.l.b16 %v105
    %v445 = vunpack.c.l.b16 %v106
    %v446 = vunpack.c.l.b16 %v107
    %v447 = vunpack.c.l.b16 %v108
    %v448 = vunpack.c.l.b16 %v109
    %v449 = vunpack.c.l.b16 %v110
    %v450 = vunpack.c.l.b16 %v111
    %v451 = vunpack.c.l.b16 %v112
    %v452 = vunpack.c.l.b16 %v113
    %v453 = vunpack.c.l.b16 %v114
    %v454 = vpack.c.b16 %v423, %v422
    %v455 = vpack.c.b16 %v425, %v424
    %v456 = vpack.c.b16 %v427, %v426
    %v457 = vpack.c.b16 %v429, %v428
    %v458 = vpack.c.b16 %v431, %v430
    %v459 = vpack.c.b16 %v433, %v432
    %v460 = vpack.c.b16 %v435, %v434
    %v461 = vpack.c.b16 %v437, %v436
    %v462 = vpack.c.b16 %v439, %v438
    %v463 = vpack.c.b16 %v441, %v440
    %v464 = vpack.c.b16 %v443, %v442
    %v465 = vpack.c.b16 %v445, %v444
    %v466 = vpack.c.b16 %v447, %v446
    %v467 = vpack.c.b16 %v449, %v448
    %v468 = vpack.c.b16 %v451, %v450
    %v469 = vpack.c.b16 %v453, %v452
    %486 = vmatpush.bf16.msra.mxu0 %v461
    %487 = vmatpush.bf16.msra.mxu0 %v460
    %488 = vmatpush.bf16.msra.mxu0 %v459
    %489 = vmatpush.bf16.msra.mxu0 %v458
    %490 = vmatpush.bf16.msra.mxu0 %v457
    %491 = vmatpush.bf16.msra.mxu0 %v456
    %492 = vmatpush.bf16.msra.mxu0 %v455
    %493 = vmatpush.bf16.msra.mxu0 %v454
    %494 = vmatmul.bf16.gmra.mxu0 %v385
    %v495 = vpop.f32.mrf.mxu0
    %v496 = vadd.f32 %v388, %v495
    %v497 = vpop.f32.mrf.mxu0
    %498 = vdwg.mxu0
    %499 = vmatpush.bf16.msra.mxu0 %v469
    %500 = vmatpush.bf16.msra.mxu0 %v468
    %501 = vmatpush.bf16.msra.mxu0 %v467
    %502 = vmatpush.bf16.msra.mxu0 %v466
    %503 = vmatpush.bf16.msra.mxu0 %v465
    %504 = vmatpush.bf16.msra.mxu0 %v464
    %505 = vmatpush.bf16.msra.mxu0 %v463
    %506 = vmatpush.bf16.msra.mxu0 %v462
    %507 = vmatmul.bf16.gmra.mxu0 %v386
    %v508 = vpop.f32.mrf.mxu0
    %v509 = vadd.f32 %v496, %v508
    %v510 = vpop.f32.mrf.mxu0
    %511 = vdwg.mxu0
    %vm512 = vcmask 9216
    %v513 = vsel %vm512, %v509, -inf
    %514 = vmax.xlane.f32.xlu0 %v513
    %v515 = vpop.xlane.xlu0 %514
    %v516 = vsub.f32 %v509, %v515
    %v517 = vmul.f32 %v516, 1.442695
    %v518 = vpow.pop %v517
    %v519 = vsel %vm512, %v518, 0.0
    %520 = vadd.xlane.f32.xlu0 %v519
    %v521 = vpop.xlane.xlu0 %520
    %v522 = vrcp.pop %v521
    %v523 = vmul.f32 %v518, %v522
    %524 = vst.msk [vmem:[#allocation5] sm:$0x3] %vm512, %v523
    %v525 = vlaneseq
    %v526 = vand.u32 %v525, 127
    %vm527 = vcmp.eq.s32.totalorder %v526, 1
    %v528 = vmul.f32 %v523, 1.442695
    %v529 = vpow.pop %v528
    %v530 = vsel %vm527, %v529, %v523
    %vm531 = vcmask 8192
    %532 = vst.msk [vmem:[%s8] sm:$0x1] %vm531, %v530
    // Predicated region
    $region34: #{actor_forward.1} parent=1 // pred_check
      _
    $region35: #{actor_forward.1} parent=1 // pred_check_branch
      %534 = sbr.rel (0) target = $region37
    $region36: #{actor_forward.1} parent=1 // pred_region
      %536 = vsyncadd [#allocation4], 0
      %s538 = sshll.u32 [#allocation5], 4
      %s539 = int_to_ptr.vmem [resolvable:$true] %s538
      %s540 = sshll.u32 %s7, 4
      %s541 = int_to_ptr.hbm [resolvable:$true] %s540
      %543 = dma.vmem_to_hbm [thread:$0]  %s539, 32, %s541, [#allocation4]
    $region37: #{actor_forward.1} parent=1 // pred_fallthru
      _
    // Predicated region
    $region38: #{actor_forward.1} parent=1 // pred_check
      _
    $region39: #{actor_forward.1} parent=1 // pred_check_branch
      %545 = sbr.rel (0) target = $region41
    $region40: #{actor_forward.1} parent=1 // pred_region
      _
    $region41: #{actor_forward.1} parent=1 // pred_fallthru
      _
    // Predicated region
    $region42: #{actor_forward.1} parent=1 // pred_check
      _
    $region43: #{actor_forward.1} parent=1 // pred_check_branch
      %547 = sbr.rel (0) target = $region45
    $region44: #{actor_forward.1} parent=1 // pred_region
      %549 = dma.done [#allocation4], 32
    $region45: #{actor_forward.1} parent=1 // pred_fallthru
      _
    // Predicated region
    $region46: #{actor_forward.1} parent=1 // pred_check
      _
    $region47: #{actor_forward.1} parent=1 // pred_check_branch
      %551 = sbr.rel (0) target = $region49
    $region48: #{actor_forward.1} parent=1 // pred_region
      _
    $region49: #{actor_forward.1} parent=1 // pred_fallthru
      _
    %552 = vsyncpa [#allocation3], 1
    %553 = vsyncpa [#allocation4], 1

</llo_original>
